<compile_context>
chip_gen: v5e
topology: v5e:2x2
jax: 0.10.0
libtpu: 0.0.40
codegen_flags: <defaults>
</compile_context>

<pallas_src>
import functools

import jax
import jax.numpy as jnp
from jax.experimental import pallas as pl
from jax.experimental.pallas import tpu as pltpu

LANE = 128


def _round_up(x, m):
    return ((x + m - 1) // m) * m


def actor_kernel(x_ref, w1_ref, b1_ref, w2_ref, b2_ref, w3_ref, b3_ref, o_ref):
    # One batch tile per grid step; weights are whole (padded) arrays held in VMEM.
    x = x_ref[...]                      # (tb, n_in)
    n_in = x_ref.shape[1]
    w1 = w1_ref[...]                    # (n_in, Fp)
    b1 = b1_ref[...]                    # (1, Fp)

    if n_in <= 8:
        # Tiny contraction depth: VPU broadcast multiply-adds beat an MXU
        # fill/drain for a K=4 matmul. Unrolled at trace time (n_in static).
        h1 = b1 + x[:, 0:1] * w1[0:1, :]
        for k in range(1, n_in):
            h1 = h1 + x[:, k:k + 1] * w1[k:k + 1, :]
    else:
        h1 = jnp.dot(x, w1, preferred_element_type=jnp.float32) + b1
    h1 = jnp.tanh(h1)

    h2 = jnp.tanh(
        jnp.dot(h1, w2_ref[...], preferred_element_type=jnp.float32) + b2_ref[...]
    )
    a = jnp.dot(h2, w3_ref[...], preferred_element_type=jnp.float32) + b3_ref[...]
    o_ref[...] = a.astype(o_ref.dtype)


def prepare_params(params):
    """Zero-pad params once so feature/output dims are lane-dense (128 multiples).

    Padded columns stay exactly zero through tanh (tanh(0)=0) and padded rows of
    the next weight are zero, so the logical outputs are unchanged.
    Returns (padded_params, n_output).
    """
    w1, b1, w2, b2, w3, b3 = params
    n_in, n_feat = w1.shape
    n_out = w3.shape[1]
    fp = _round_up(n_feat, LANE)
    op = _round_up(n_out, LANE)

    def pad2(a, rows, cols):
        return jnp.pad(a, ((0, rows - a.shape[0]), (0, cols - a.shape[1])))

    padded = (
        pad2(w1, n_in, fp), pad2(b1, 1, fp),
        pad2(w2, fp, fp),   pad2(b2, 1, fp),
        pad2(w3, fp, op),   pad2(b3, 1, op),
    )
    return padded, n_out


@functools.partial(jax.jit, static_argnames=("n_output", "block_b"))
def actor_forward(state, padded_params, n_output, block_b=256):
    """state: (B, 1, n_input) or (B, n_input); returns (B, n_output) float32."""
    # torch.squeeze(state, 1): only valid/needed when dim 1 has size 1.
    if state.ndim == 3:
        if state.shape[1] != 1:
            raise ValueError(
                f"expected state dim 1 to be 1 (got {state.shape[1]}); "
                "the PyTorch module squeezes exactly that dim")
        state = jnp.squeeze(state, axis=1)
    if state.ndim != 2:
        raise ValueError(f"state must be 2-D or (B,1,n_in) 3-D, got {state.shape}")
    x = state.astype(jnp.float32)
    batch, n_in = x.shape

    w1, b1, w2, b2, w3, b3 = padded_params
    fp = w1.shape[1]
    op = w3.shape[1]

    # Batch tiling: one block for small batches (rounded to sublane width 8),
    # otherwise 256-row tiles (fills the 2x256^2 MXU on v6e/v7x; fine on v5e).
    # TODO(synk): optionally cast x / weights to bf16 on v6e/v7x once the
    # problem is large enough to be MXU/HBM-bound (kept f32 here for exactness).
    if batch <= block_b:
        tile_b = _round_up(batch, 8)
    else:
        tile_b = block_b
    batch_pad = _round_up(batch, tile_b)
    if batch_pad != batch:
        x = jnp.pad(x, ((0, batch_pad - batch), (0, 0)))
    grid = (batch_pad // tile_b,)

    cost = pl.CostEstimate(
        flops=2 * batch_pad * (n_in * fp + fp * fp + fp * op),
        transcendentals=2 * batch_pad * fp,
        bytes_accessed=4 * (batch_pad * (n_in + op)
                            + n_in * fp + fp * fp + fp * op + 2 * fp + op),
    )

    act_spec = pl.BlockSpec((tile_b, n_in), lambda i: (i, 0))
    out_spec = pl.BlockSpec((tile_b, op), lambda i: (i, 0))
    # Constant index_map -> weights/biases stay VMEM-resident across batch tiles.
    weight_specs = [
        pl.BlockSpec(w1.shape, lambda i: (0, 0)),
        pl.BlockSpec(b1.shape, lambda i: (0, 0)),
        pl.BlockSpec(w2.shape, lambda i: (0, 0)),
        pl.BlockSpec(b2.shape, lambda i: (0, 0)),
        pl.BlockSpec(w3.shape, lambda i: (0, 0)),
        pl.BlockSpec(b3.shape, lambda i: (0, 0)),
    ]

    out_padded = pl.pallas_call(
        actor_kernel,
        out_shape=jax.ShapeDtypeStruct((batch_pad, op), jnp.float32),
        grid=grid,
        in_specs=[act_spec] + weight_specs,
        out_specs=out_spec,
        compiler_params=pltpu.CompilerParams(
            dimension_semantics=("parallel",)),
        cost_estimate=cost,
    )(x, w1, b1, w2, b2, w3, b3)

    return out_padded[:batch, :n_output]


def init_params(key, n_input, n_features, n_output):
    """Deterministic init matching the PyTorch module's __init__ semantics.

    - weights: xavier_uniform with gain('tanh')=5/3 for h1/h2, gain('linear')=1 for h3
    - biases: default nn.Linear init, uniform(-1/sqrt(fan_in), 1/sqrt(fan_in))
    Weights are returned in (in, out) layout (transposed vs torch Linear).
    """
    def xavier_uniform(k, fan_in, fan_out, gain):
        bound = gain * (6.0 / (fan_in + fan_out)) ** 0.5
        w = jax.random.uniform(k, (fan_out, fan_in), jnp.float32, -bound, bound)
        return w.T

    def bias_init(k, fan_in, fan_out):
        bound = 1.0 / (fan_in ** 0.5)
        return jax.random.uniform(k, (1, fan_out), jnp.float32, -bound, bound)

    ks = jax.random.split(key, 6)
    gain_tanh = 5.0 / 3.0
    w1 = xavier_uniform(ks[0], n_input, n_features, gain_tanh)
    b1 = bias_init(ks[1], n_input, n_features)
    w2 = xavier_uniform(ks[2], n_features, n_features, gain_tanh)
    b2 = bias_init(ks[3], n_features, n_features)
    w3 = xavier_uniform(ks[4], n_features, n_output, 1.0)
    b3 = bias_init(ks[5], n_features, n_output)
    return (w1, b1, w2, b2, w3, b3)


def _reference(state, params):
    x = jnp.squeeze(state, axis=1) if state.ndim == 3 else state
    w1, b1, w2, b2, w3, b3 = params
    h = jnp.tanh(x.astype(jnp.float32) @ w1 + b1)
    h = jnp.tanh(h @ w2 + b2)
    return h @ w3 + b3


if __name__ == "__main__":
    # CartPole SAC-like sizes: state dim 4, one continuous action, 32 features.
    batch, n_input, n_features, n_output = 8, 4, 32, 1

    key = jax.random.PRNGKey(0)
    k_params, k_state, k_big = jax.random.split(key, 3)
    params = init_params(k_params, n_input, n_features, n_output)
    padded_params, n_out = prepare_params(params)

    # Small per-step case: state comes in with a singleton middle dim,
    # as implied by torch.squeeze(state, 1).
    state = jax.random.normal(k_state, (batch, 1, n_input), dtype=jnp.float32)
    out = actor_forward(state, padded_params, n_out)
    jax.block_until_ready(out)
    ref = _reference(state, params)
    assert out.shape == (batch, n_output)
    assert jnp.allclose(out, ref, atol=1e-5), "small-batch mismatch vs reference"

    # Larger batch exercises the grid / padding / megacore-parallel path.
    big_batch = 300  # -> tile_b=256, padded to 512, grid=(2,)
    big_state = jax.random.normal(k_big, (big_batch, n_input), dtype=jnp.float32)
    big_out = actor_forward(big_state, padded_params, n_out)
    jax.block_until_ready(big_out)
    big_ref = _reference(big_state, params)
    assert big_out.shape == (big_batch, n_output)
    assert jnp.allclose(big_out, big_ref, atol=1e-5), "tiled-batch mismatch vs reference"

    print("KERNEL_OK")
</pallas_src>

<mosaic_0001>
module attributes {stable_mosaic.version = 11 : i64} {
  func.func @actor_kernel(%arg0: i32, %arg1: memref<8x4xf32, #tpu.memory_space<vmem>>, %arg2: memref<4x128xf32, #tpu.memory_space<vmem>>, %arg3: memref<1x128xf32, #tpu.memory_space<vmem>>, %arg4: memref<128x128xf32, #tpu.memory_space<vmem>>, %arg5: memref<1x128xf32, #tpu.memory_space<vmem>>, %arg6: memref<128x128xf32, #tpu.memory_space<vmem>>, %arg7: memref<1x128xf32, #tpu.memory_space<vmem>>, %arg8: memref<8x128xf32, #tpu.memory_space<vmem>>) attributes {dimension_semantics = [#tpu.dimension_semantics<parallel>], iteration_bounds = array<i64: 1>, scalar_prefetch = 0 : i64, scratch_operands = 0 : i64, tpu.core_type = #tpu.core_type<tc>, window_params = [{transform_indices = @transform_0, window_bounds = array<i64: 8, 4>}, {pipeline_mode = #tpu.pipeline_mode<synchronous>, transform_indices = @transform_1, window_bounds = array<i64: 4, 128>}, {pipeline_mode = #tpu.pipeline_mode<synchronous>, transform_indices = @transform_2, window_bounds = array<i64: 1, 128>}, {pipeline_mode = #tpu.pipeline_mode<synchronous>, transform_indices = @transform_3, window_bounds = array<i64: 128, 128>}, {pipeline_mode = #tpu.pipeline_mode<synchronous>, transform_indices = @transform_4, window_bounds = array<i64: 1, 128>}, {pipeline_mode = #tpu.pipeline_mode<synchronous>, transform_indices = @transform_5, window_bounds = array<i64: 128, 128>}, {pipeline_mode = #tpu.pipeline_mode<synchronous>, transform_indices = @transform_6, window_bounds = array<i64: 1, 128>}, {transform_indices = @transform_7, window_bounds = array<i64: 8, 128>}]} {
    %c0 = arith.constant 0 : index
    %c0_0 = arith.constant 0 : index
    %0 = vector.load %arg1[%c0, %c0_0] : memref<8x4xf32, #tpu.memory_space<vmem>>, vector<8x4xf32>
    %c0_1 = arith.constant 0 : index
    %c0_2 = arith.constant 0 : index
    %1 = vector.load %arg2[%c0_1, %c0_2] : memref<4x128xf32, #tpu.memory_space<vmem>>, vector<4x128xf32>
    %c0_3 = arith.constant 0 : index
    %c0_4 = arith.constant 0 : index
    %2 = vector.load %arg3[%c0_3, %c0_4] : memref<1x128xf32, #tpu.memory_space<vmem>>, vector<1x128xf32>
    %3 = vector.extract_strided_slice %0 {offsets = [0, 0], sizes = [8, 1], strides = [1, 1]} : vector<8x4xf32> to vector<8x1xf32>
    %4 = vector.extract_strided_slice %1 {offsets = [0, 0], sizes = [1, 128], strides = [1, 1]} : vector<4x128xf32> to vector<1x128xf32>
    %5 = vector.broadcast %3 : vector<8x1xf32> to vector<8x128xf32>
    %6 = vector.broadcast %4 : vector<1x128xf32> to vector<8x128xf32>
    %7 = arith.mulf %5, %6 : vector<8x128xf32>
    %8 = vector.broadcast %2 : vector<1x128xf32> to vector<8x128xf32>
    %9 = arith.addf %8, %7 : vector<8x128xf32>
    %10 = vector.extract_strided_slice %0 {offsets = [0, 1], sizes = [8, 1], strides = [1, 1]} : vector<8x4xf32> to vector<8x1xf32>
    %11 = vector.extract_strided_slice %1 {offsets = [1, 0], sizes = [1, 128], strides = [1, 1]} : vector<4x128xf32> to vector<1x128xf32>
    %12 = vector.broadcast %10 : vector<8x1xf32> to vector<8x128xf32>
    %13 = vector.broadcast %11 : vector<1x128xf32> to vector<8x128xf32>
    %14 = arith.mulf %12, %13 : vector<8x128xf32>
    %15 = arith.addf %9, %14 : vector<8x128xf32>
    %16 = vector.extract_strided_slice %0 {offsets = [0, 2], sizes = [8, 1], strides = [1, 1]} : vector<8x4xf32> to vector<8x1xf32>
    %17 = vector.extract_strided_slice %1 {offsets = [2, 0], sizes = [1, 128], strides = [1, 1]} : vector<4x128xf32> to vector<1x128xf32>
    %18 = vector.broadcast %16 : vector<8x1xf32> to vector<8x128xf32>
    %19 = vector.broadcast %17 : vector<1x128xf32> to vector<8x128xf32>
    %20 = arith.mulf %18, %19 : vector<8x128xf32>
    %21 = arith.addf %15, %20 : vector<8x128xf32>
    %22 = vector.extract_strided_slice %0 {offsets = [0, 3], sizes = [8, 1], strides = [1, 1]} : vector<8x4xf32> to vector<8x1xf32>
    %23 = vector.extract_strided_slice %1 {offsets = [3, 0], sizes = [1, 128], strides = [1, 1]} : vector<4x128xf32> to vector<1x128xf32>
    %24 = vector.broadcast %22 : vector<8x1xf32> to vector<8x128xf32>
    %25 = vector.broadcast %23 : vector<1x128xf32> to vector<8x128xf32>
    %26 = arith.mulf %24, %25 : vector<8x128xf32>
    %27 = arith.addf %21, %26 : vector<8x128xf32>
    %28 = math.tanh %27 : vector<8x128xf32>
    %c0_5 = arith.constant 0 : index
    %c0_6 = arith.constant 0 : index
    %29 = vector.load %arg4[%c0_5, %c0_6] : memref<128x128xf32, #tpu.memory_space<vmem>>, vector<128x128xf32>
    %cst = arith.constant dense<0.000000e+00> : vector<8x128xf32>
    %30 = tpu.matmul %28, %29, %cst {dimension_numbers = #tpu.dot_dimension_numbers<[1], [0], [0], [1], [0, 0, 1, 1], [], []>} : vector<8x128xf32>, vector<128x128xf32>, vector<8x128xf32> -> vector<8x128xf32>
    %c0_7 = arith.constant 0 : index
    %c0_8 = arith.constant 0 : index
    %31 = vector.load %arg5[%c0_7, %c0_8] : memref<1x128xf32, #tpu.memory_space<vmem>>, vector<1x128xf32>
    %32 = vector.broadcast %31 : vector<1x128xf32> to vector<8x128xf32>
    %33 = arith.addf %30, %32 : vector<8x128xf32>
    %34 = math.tanh %33 : vector<8x128xf32>
    %c0_9 = arith.constant 0 : index
    %c0_10 = arith.constant 0 : index
    %35 = vector.load %arg6[%c0_9, %c0_10] : memref<128x128xf32, #tpu.memory_space<vmem>>, vector<128x128xf32>
    %cst_11 = arith.constant dense<0.000000e+00> : vector<8x128xf32>
    %36 = tpu.matmul %34, %35, %cst_11 {dimension_numbers = #tpu.dot_dimension_numbers<[1], [0], [0], [1], [0, 0, 1, 1], [], []>} : vector<8x128xf32>, vector<128x128xf32>, vector<8x128xf32> -> vector<8x128xf32>
    %c0_12 = arith.constant 0 : index
    %c0_13 = arith.constant 0 : index
    %37 = vector.load %arg7[%c0_12, %c0_13] : memref<1x128xf32, #tpu.memory_space<vmem>>, vector<1x128xf32>
    %38 = vector.broadcast %37 : vector<1x128xf32> to vector<8x128xf32>
    %39 = arith.addf %36, %38 : vector<8x128xf32>
    %c0_14 = arith.constant 0 : index
    %c0_15 = arith.constant 0 : index
    %40 = vector.load %arg8[%c0_14, %c0_15] : memref<8x128xf32, #tpu.memory_space<vmem>>, vector<8x128xf32>
    tpu.vector_store %arg8[%c0_14, %c0_15], %39 {strides = array<i32>} : memref<8x128xf32, #tpu.memory_space<vmem>>, vector<8x128xf32>,
    return
  }
  func.func @transform_0(%arg0: i32) -> (i32, i32) {
    %c0_i32 = arith.constant 0 : i32
    %c0_i32_0 = arith.constant 0 : i32
    return %arg0, %c0_i32 : i32, i32
  }
  func.func @transform_1(%arg0: i32) -> (i32, i32) {
    %c0_i32 = arith.constant 0 : i32
    %c0_i32_0 = arith.constant 0 : i32
    %c0_i32_1 = arith.constant 0 : i32
    return %c0_i32, %c0_i32_0 : i32, i32
  }
  func.func @transform_2(%arg0: i32) -> (i32, i32) {
    %c0_i32 = arith.constant 0 : i32
    %c0_i32_0 = arith.constant 0 : i32
    %c0_i32_1 = arith.constant 0 : i32
    return %c0_i32, %c0_i32_0 : i32, i32
  }
  func.func @transform_3(%arg0: i32) -> (i32, i32) {
    %c0_i32 = arith.constant 0 : i32
    %c0_i32_0 = arith.constant 0 : i32
    %c0_i32_1 = arith.constant 0 : i32
    return %c0_i32, %c0_i32_0 : i32, i32
  }
  func.func @transform_4(%arg0: i32) -> (i32, i32) {
    %c0_i32 = arith.constant 0 : i32
    %c0_i32_0 = arith.constant 0 : i32
    %c0_i32_1 = arith.constant 0 : i32
    return %c0_i32, %c0_i32_0 : i32, i32
  }
  func.func @transform_5(%arg0: i32) -> (i32, i32) {
    %c0_i32 = arith.constant 0 : i32
    %c0_i32_0 = arith.constant 0 : i32
    %c0_i32_1 = arith.constant 0 : i32
    return %c0_i32, %c0_i32_0 : i32, i32
  }
  func.func @transform_6(%arg0: i32) -> (i32, i32) {
    %c0_i32 = arith.constant 0 : i32
    %c0_i32_0 = arith.constant 0 : i32
    %c0_i32_1 = arith.constant 0 : i32
    return %c0_i32, %c0_i32_0 : i32, i32
  }
  func.func @transform_7(%arg0: i32) -> (i32, i32) {
    %c0_i32 = arith.constant 0 : i32
    %c0_i32_0 = arith.constant 0 : i32
    return %arg0, %c0_i32 : i32, i32
  }
}

</mosaic_0001>

<llo_original>
// kernel: actor_forward.1
$region0: #{actor_forward.1}
  #allocation0 [shape = 'u32[]', space=smem, size = 0x4, offset = 0x4, fixed_abs, tag = 'smem constant byte address 0x4 - core index']
  #allocation1 [shape = 'u32[72,128]{1,0:T(1,128)}', space=vmem, size = 0x9000, scoped, tag = 'internal scratch']
  %s0 = inlined_call_operand.vmem [shape: f32[8,4], index: 0, kind: input, shape index: {}]
  %s1 = inlined_call_operand.vmem [shape: f32[4,128], index: 1, kind: input, shape index: {}]
  %s2 = inlined_call_operand.vmem [shape: f32[1,128], index: 2, kind: input, shape index: {}]
  %s3 = inlined_call_operand.hbm [shape: f32[128,128], index: 3, kind: input, shape index: {}]
  %s4 = inlined_call_operand.vmem [shape: f32[1,128], index: 4, kind: input, shape index: {}]
  %s5 = inlined_call_operand.hbm [shape: f32[128,128], index: 5, kind: input, shape index: {}]
  %s6 = inlined_call_operand.vmem [shape: f32[1,128], index: 6, kind: input, shape index: {}]
  %s7 = inlined_call_operand.vmem [shape: f32[8,128], index: 7, kind: output, shape index: {}]
  %s8 = sld [smem:[#allocation0]]
  $region46: #{actor_forward.1} parent=0
    _
  %s10 = ssub.s32 1, %s8
  %s11 = scalar_select 0, %s10, %s8
  $region1: #{actor_forward.1} parent=0
    #allocation2 [shape = 'u8[65536]{0}', space=vmem, size = 0x10000, scoped, tag = 'input window, operand 3, single buffered']
    #allocation3 [shape = 's32[1]{0}', space=sflag, size = 0x4, scoped, tag = 'scoped memory for actor_forward.1']
    #allocation4 [shape = 'u8[65536]{0}', space=vmem, size = 0x10000, scoped, tag = 'input window, operand 5, single buffered']
    #allocation5 [shape = 's32[1]{0}', space=sflag, size = 0x4, scoped, tag = 'scoped memory for actor_forward.1']
    %12 = vsyncpa [#allocation3], 0
    %13 = vsyncpa [#allocation5], 0
    // Predicated region
    $region2: #{actor_forward.1} parent=1 // pred_check
      _
    $region3: #{actor_forward.1} parent=1 // pred_check_branch
      %15 = sbr.rel (0) target = $region5
    $region4: #{actor_forward.1} parent=1 // pred_region
      _
    $region5: #{actor_forward.1} parent=1 // pred_fallthru
      _
    // Predicated region
    $region6: #{actor_forward.1} parent=1 // pred_check
      _
    $region7: #{actor_forward.1} parent=1 // pred_check_branch
      %17 = sbr.rel (0) target = $region9
    $region8: #{actor_forward.1} parent=1 // pred_region
      _
    $region9: #{actor_forward.1} parent=1 // pred_fallthru
      _
    // Predicated region
    $region10: #{actor_forward.1} parent=1 // pred_check
      _
    $region11: #{actor_forward.1} parent=1 // pred_check_branch
      %19 = sbr.rel (0) target = $region13
    $region12: #{actor_forward.1} parent=1 // pred_region
      _
    $region13: #{actor_forward.1} parent=1 // pred_fallthru
      _
    // Predicated region
    $region14: #{actor_forward.1} parent=1 // pred_check
      _
    $region15: #{actor_forward.1} parent=1 // pred_check_branch
      %21 = sbr.rel (0) target = $region17
    $region16: #{actor_forward.1} parent=1 // pred_region
      %23 = vsyncadd [#allocation3], 0
      %s24 = sshll.u32 %s3, 4
      %s25 = int_to_ptr.hbm [resolvable:$true] %s24
      %s26 = sshll.u32 [#allocation2], 4
      %s27 = int_to_ptr.vmem [resolvable:$true] %s26
      %32 = dma.hbm_to_vmem [thread:$0]  %s25, 2048, %s27, [#allocation3], 128, 128, 8
    $region17: #{actor_forward.1} parent=1 // pred_fallthru
      _
    // Predicated region
    $region18: #{actor_forward.1} parent=1 // pred_check
      _
    $region19: #{actor_forward.1} parent=1 // pred_check_branch
      %34 = sbr.rel (0) target = $region21
    $region20: #{actor_forward.1} parent=1 // pred_region
      _
    $region21: #{actor_forward.1} parent=1 // pred_fallthru
      _
    // Predicated region
    $region22: #{actor_forward.1} parent=1 // pred_check
      _
    $region23: #{actor_forward.1} parent=1 // pred_check_branch
      %36 = sbr.rel (0) target = $region25
    $region24: #{actor_forward.1} parent=1 // pred_region
      %38 = vsyncadd [#allocation5], 0
      %s39 = sshll.u32 %s5, 4
      %s40 = int_to_ptr.hbm [resolvable:$true] %s39
      %s41 = sshll.u32 [#allocation4], 4
      %s42 = int_to_ptr.vmem [resolvable:$true] %s41
      %47 = dma.hbm_to_vmem [thread:$0]  %s40, 2048, %s42, [#allocation5], 128, 128, 8
    $region25: #{actor_forward.1} parent=1 // pred_fallthru
      _
    // Predicated region
    $region26: #{actor_forward.1} parent=1 // pred_check
      _
    $region27: #{actor_forward.1} parent=1 // pred_check_branch
      %49 = sbr.rel (0) target = $region29
    $region28: #{actor_forward.1} parent=1 // pred_region
      _
    $region29: #{actor_forward.1} parent=1 // pred_fallthru
      _
    // Predicated region
    $region30: #{actor_forward.1} parent=1 // pred_check
      _
    $region31: #{actor_forward.1} parent=1 // pred_check_branch
      %51 = sbr.rel (0) target = $region33
    $region32: #{actor_forward.1} parent=1 // pred_region
      %53 = dma.done [#allocation3], 2048
    $region33: #{actor_forward.1} parent=1 // pred_fallthru
      _
    // Predicated region
    $region34: #{actor_forward.1} parent=1 // pred_check
      _
    $region35: #{actor_forward.1} parent=1 // pred_check_branch
      %55 = sbr.rel (0) target = $region37
    $region36: #{actor_forward.1} parent=1 // pred_region
      %57 = dma.done [#allocation5], 2048
    $region37: #{actor_forward.1} parent=1 // pred_fallthru
      _
    %v58 = vld [vmem:[%s0] sm:$0xff]
    %v59 = vld [vmem:[%s1] sm:$0xf]
    %v60 = vld [vmem:[%s2] sm:$0x1]
    %62 = vset.pattern.permute.xlu0 0
    %63 = vperm.xlu0 %62, %v58
    %v64 = vpop.permute.xlu0 %63
    %v66 = vperm.slane %v59, 0
    %v67 = vmul.f32 %v64, %v66
    %v69 = vperm.slane %v60, 0
    %v71 = vadd.f32 %v69, %v67
    %72 = vset.pattern.permute.xlu0 1
    %73 = vperm.xlu0 %72, %v58
    %v74 = vpop.permute.xlu0 %73
    %v76 = vperm.slane %v59, 1
    %v77 = vmul.f32 %v74, %v76
    %v78 = vadd.f32 %v71, %v77
    %79 = vset.pattern.permute.xlu0 2
    %80 = vperm.xlu0 %79, %v58
    %v81 = vpop.permute.xlu0 %80
    %v83 = vperm.slane %v59, 2
    %v84 = vmul.f32 %v81, %v83
    %v85 = vadd.f32 %v78, %v84
    %86 = vset.pattern.permute.xlu0 3
    %87 = vperm.xlu0 %86, %v58
    %v88 = vpop.permute.xlu0 %87
    %v90 = vperm.slane %v59, 3
    %v91 = vmul.f32 %v88, %v90
    %v92 = vadd.f32 %v85, %v91
    %v93 = vtanh.pop %v92
    %v94 = vld [vmem:[#allocation2] sm:$0xff]
    %v95 = vld [vmem:[#allocation2 + $0x8] sm:$0xff]
    %v96 = vld [vmem:[#allocation2 + $0x10] sm:$0xff]
    %v97 = vld [vmem:[#allocation2 + $0x18] sm:$0xff]
    %v98 = vld [vmem:[#allocation2 + $0x20] sm:$0xff]
    %v99 = vld [vmem:[#allocation2 + $0x28] sm:$0xff]
    %v100 = vld [vmem:[#allocation2 + $0x30] sm:$0xff]
    %v101 = vld [vmem:[#allocation2 + $0x38] sm:$0xff]
    %v102 = vld [vmem:[#allocation2 + $0x40] sm:$0xff]
    %v103 = vld [vmem:[#allocation2 + $0x48] sm:$0xff]
    %v104 = vld [vmem:[#allocation2 + $0x50] sm:$0xff]
    %v105 = vld [vmem:[#allocation2 + $0x58] sm:$0xff]
    %v106 = vld [vmem:[#allocation2 + $0x60] sm:$0xff]
    %v107 = vld [vmem:[#allocation2 + $0x68] sm:$0xff]
    %v108 = vld [vmem:[#allocation2 + $0x70] sm:$0xff]
    %v109 = vld [vmem:[#allocation2 + $0x78] sm:$0xff]
    %v110 = vld [vmem:[%s4] sm:$0x1]
    %v112 = vperm.slane %v110, 0
    %114 = vmatpush.msra.mxu0 %v109
    %115 = vmatpush.msra.mxu0 %v108
    %116 = vmatpush.msra.mxu0 %v107
    %117 = vmatpush.msra.mxu0 %v106
    %118 = vmatpush.msra.mxu0 %v105
    %119 = vmatpush.msra.mxu0 %v104
    %120 = vmatpush.msra.mxu0 %v103
    %121 = vmatpush.msra.mxu0 %v102
    %122 = vmatpush.msra.mxu0 %v101
    %123 = vmatpush.msra.mxu0 %v100
    %124 = vmatpush.msra.mxu0 %v99
    %125 = vmatpush.msra.mxu0 %v98
    %126 = vmatpush.msra.mxu0 %v97
    %127 = vmatpush.msra.mxu0 %v96
    %128 = vmatpush.msra.mxu0 %v95
    %129 = vmatpush.msra.mxu0 %v94
    %130 = vmatmul.f32.gmra.mxu0 %v93
    %v131 = vpop.f32.mrf.mxu0
    %v132 = vadd.f32 %v112, %v131
    %133 = vdwg.mxu0
    %v134 = vtanh.pop %v132
    %v135 = vld [vmem:[#allocation4] sm:$0xff]
    %v136 = vld [vmem:[#allocation4 + $0x8] sm:$0xff]
    %v137 = vld [vmem:[#allocation4 + $0x10] sm:$0xff]
    %v138 = vld [vmem:[#allocation4 + $0x18] sm:$0xff]
    %v139 = vld [vmem:[#allocation4 + $0x20] sm:$0xff]
    %v140 = vld [vmem:[#allocation4 + $0x28] sm:$0xff]
    %v141 = vld [vmem:[#allocation4 + $0x30] sm:$0xff]
    %v142 = vld [vmem:[#allocation4 + $0x38] sm:$0xff]
    %v143 = vld [vmem:[#allocation4 + $0x40] sm:$0xff]
    %v144 = vld [vmem:[#allocation4 + $0x48] sm:$0xff]
    %v145 = vld [vmem:[#allocation4 + $0x50] sm:$0xff]
    %v146 = vld [vmem:[#allocation4 + $0x58] sm:$0xff]
    %v147 = vld [vmem:[#allocation4 + $0x60] sm:$0xff]
    %v148 = vld [vmem:[#allocation4 + $0x68] sm:$0xff]
    %v149 = vld [vmem:[#allocation4 + $0x70] sm:$0xff]
    %v150 = vld [vmem:[#allocation4 + $0x78] sm:$0xff]
    %v151 = vld [vmem:[%s6] sm:$0x1]
    %v153 = vperm.slane %v151, 0
    %155 = vmatpush.msra.mxu0 %v150
    %156 = vmatpush.msra.mxu0 %v149
    %157 = vmatpush.msra.mxu0 %v148
    %158 = vmatpush.msra.mxu0 %v147
    %159 = vmatpush.msra.mxu0 %v146
    %160 = vmatpush.msra.mxu0 %v145
    %161 = vmatpush.msra.mxu0 %v144
    %162 = vmatpush.msra.mxu0 %v143
    %163 = vmatpush.msra.mxu0 %v142
    %164 = vmatpush.msra.mxu0 %v141
    %165 = vmatpush.msra.mxu0 %v140
    %166 = vmatpush.msra.mxu0 %v139
    %167 = vmatpush.msra.mxu0 %v138
    %168 = vmatpush.msra.mxu0 %v137
    %169 = vmatpush.msra.mxu0 %v136
    %170 = vmatpush.msra.mxu0 %v135
    %171 = vmatmul.f32.gmra.mxu0 %v134
    %v172 = vpop.f32.mrf.mxu0
    %v173 = vadd.f32 %v153, %v172
    %174 = vdwg.mxu0
    %175 = vst [vmem:[%s7] sm:$0xff] %v173
    // Predicated region
    $region38: #{actor_forward.1} parent=1 // pred_check
      _
    $region39: #{actor_forward.1} parent=1 // pred_check_branch
      %177 = sbr.rel (0) target = $region41
    $region40: #{actor_forward.1} parent=1 // pred_region
      _
    $region41: #{actor_forward.1} parent=1 // pred_fallthru
      _
    // Predicated region
    $region42: #{actor_forward.1} parent=1 // pred_check
      _
    $region43: #{actor_forward.1} parent=1 // pred_check_branch
      %179 = sbr.rel (0) target = $region45
    $region44: #{actor_forward.1} parent=1 // pred_region
      _
    $region45: #{actor_forward.1} parent=1 // pred_fallthru
      _
    %180 = vsyncpa [#allocation3], 1
    %181 = vsyncpa [#allocation5], 1

</llo_original>
